<compile_context>
chip_gen: v5e
topology: v5e:2x2
jax: 0.10.0
libtpu: 0.0.40
codegen_flags: <defaults>
</compile_context>

<pallas_src>
import jax
import jax.numpy as jnp
from jax.experimental import pallas as pl
from jax.experimental.pallas import tpu as pltpu

EPS = 1e-4  # BiFPN_Add2.epsilon


def bifpn_add2_kernel(w_ref, x0_ref, x1_ref, out_ref):
    # w_ref  : SMEM (2,)   f32  -- raw fusion weights
    # x0_ref : VMEM (N, D) f32
    # x1_ref : VMEM (N, D) f32
    # out_ref: VMEM (2N,D) f32  -- rows [0:N] = s0*x0, rows [N:2N] = s1*x1
    n = x0_ref.shape[0]
    w0 = w_ref[0]
    w1 = w_ref[1]
    denom = w0 + w1 + EPS                 # scalar path (sreg)
    s0 = w0 / denom
    s1 = w1 / denom
    out_ref[0:n, :] = s0 * x0_ref[...]    # full-lane VPU multiply + store
    out_ref[n:2 * n, :] = s1 * x1_ref[...]


@jax.jit
def bifpn_add2(w, x0, x1):
    """BiFPN_Add2.forward([x0, x1]) with fusion weights w (shape (2,))."""
    assert x0.shape == x1.shape and x0.dtype == x1.dtype
    N = x0.shape[0]
    D = 1
    for s in x0.shape[1:]:
        D *= s
    x0_2d = x0.reshape(N, D)              # free: contiguous row-major view
    x1_2d = x1.reshape(N, D)

    out2d = pl.pallas_call(
        bifpn_add2_kernel,
        out_shape=jax.ShapeDtypeStruct((2 * N, D), x0.dtype),
        grid=(1,),
        in_specs=[
            pl.BlockSpec(memory_space=pltpu.MemorySpace.SMEM),   # w -> SMEM
            pl.BlockSpec((N, D), lambda i: (0, 0)),
            pl.BlockSpec((N, D), lambda i: (0, 0)),
        ],
        out_specs=pl.BlockSpec((2 * N, D), lambda i: (0, 0)),
        compiler_params=pltpu.CompilerParams(
            dimension_semantics=("arbitrary",)),
    )(w.astype(jnp.float32), x0_2d, x1_2d)

    return out2d.reshape((2 * N,) + x0.shape[1:])


# ----------------------------------------------------------------------------
# Pure-JAX reference mirroring the PyTorch forward
# ----------------------------------------------------------------------------
def ref_forward(w, x0, x1):
    weight = w / (jnp.sum(w) + EPS)
    return jnp.concatenate([weight[0] * x0, weight[1] * x1], axis=0)


if __name__ == "__main__":
    key = jax.random.PRNGKey(0)
    N, C, H, W = 2, 4, 16, 16
    k0, k1, kw = jax.random.split(key, 3)

    x0 = jax.random.normal(k0, (N, C, H, W), jnp.float32)
    x1 = jax.random.normal(k1, (N, C, H, W), jnp.float32)
    # The module initializes w = ones(2); perturb slightly so the
    # normalization path is exercised non-trivially.
    w = jnp.ones((2,), jnp.float32) + 0.1 * jax.random.normal(kw, (2,), jnp.float32)

    out = jax.block_until_ready(bifpn_add2(w, x0, x1))
    ref = jax.block_until_ready(ref_forward(w, x0, x1))

    assert out.shape == (2 * N, C, H, W), out.shape
    assert jnp.allclose(out, ref, atol=1e-6, rtol=1e-6), \
        float(jnp.max(jnp.abs(out - ref)))

    print("KERNEL_OK")
</pallas_src>

<mosaic_0001>
module attributes {stable_mosaic.version = 11 : i64} {
  func.func @bifpn_add2_kernel(%arg0: i32, %arg1: memref<2xf32, #tpu.memory_space<smem>>, %arg2: memref<2x1024xf32, #tpu.memory_space<vmem>>, %arg3: memref<2x1024xf32, #tpu.memory_space<vmem>>, %arg4: memref<4x1024xf32, #tpu.memory_space<vmem>>) attributes {dimension_semantics = [#tpu.dimension_semantics<arbitrary>], iteration_bounds = array<i64: 1>, scalar_prefetch = 0 : i64, scratch_operands = 0 : i64, tpu.core_type = #tpu.core_type<tc>, window_params = [{transform_indices = @transform_0, window_bounds = array<i64: 2>}, {pipeline_mode = #tpu.pipeline_mode<synchronous>, transform_indices = @transform_1, window_bounds = array<i64: 2, 1024>}, {pipeline_mode = #tpu.pipeline_mode<synchronous>, transform_indices = @transform_2, window_bounds = array<i64: 2, 1024>}, {pipeline_mode = #tpu.pipeline_mode<synchronous>, transform_indices = @transform_3, window_bounds = array<i64: 4, 1024>}]} {
    %c0 = arith.constant 0 : index
    %0 = memref.load %arg1[%c0] : memref<2xf32, #tpu.memory_space<smem>>
    %c1 = arith.constant 1 : index
    %1 = memref.load %arg1[%c1] : memref<2xf32, #tpu.memory_space<smem>>
    %2 = arith.addf %0, %1 : f32
    %cst = arith.constant 9.99999974E-5 : f32
    %3 = arith.addf %2, %cst : f32
    %4 = arith.divf %0, %3 : f32
    %5 = arith.divf %1, %3 : f32
    %c0_0 = arith.constant 0 : index
    %c0_1 = arith.constant 0 : index
    %6 = vector.load %arg2[%c0_0, %c0_1] : memref<2x1024xf32, #tpu.memory_space<vmem>>, vector<2x1024xf32>
    %7 = vector.broadcast %4 : f32 to vector<2x1024xf32>
    %8 = arith.mulf %7, %6 : vector<2x1024xf32>
    %c0_2 = arith.constant 0 : index
    %c0_3 = arith.constant 0 : index
    %9 = vector.load %arg4[%c0_2, %c0_3] : memref<4x1024xf32, #tpu.memory_space<vmem>>, vector<2x1024xf32>
    tpu.vector_store %arg4[%c0_2, %c0_3], %8 {strides = array<i32>} : memref<4x1024xf32, #tpu.memory_space<vmem>>, vector<2x1024xf32>,
    %c0_4 = arith.constant 0 : index
    %c0_5 = arith.constant 0 : index
    %10 = vector.load %arg3[%c0_4, %c0_5] : memref<2x1024xf32, #tpu.memory_space<vmem>>, vector<2x1024xf32>
    %11 = vector.broadcast %5 : f32 to vector<2x1024xf32>
    %12 = arith.mulf %11, %10 : vector<2x1024xf32>
    %c2 = arith.constant 2 : index
    %c0_6 = arith.constant 0 : index
    %13 = vector.load %arg4[%c2, %c0_6] : memref<4x1024xf32, #tpu.memory_space<vmem>>, vector<2x1024xf32>
    tpu.vector_store %arg4[%c2, %c0_6], %12 {strides = array<i32>} : memref<4x1024xf32, #tpu.memory_space<vmem>>, vector<2x1024xf32>,
    return
  }
  func.func @transform_0(%arg0: i32) -> i32 {
    %c0_i32 = arith.constant 0 : i32
    %c0_i32_0 = arith.constant 0 : i32
    return %c0_i32 : i32
  }
  func.func @transform_1(%arg0: i32) -> (i32, i32) {
    %c0_i32 = arith.constant 0 : i32
    %c0_i32_0 = arith.constant 0 : i32
    %c0_i32_1 = arith.constant 0 : i32
    return %c0_i32, %c0_i32_0 : i32, i32
  }
  func.func @transform_2(%arg0: i32) -> (i32, i32) {
    %c0_i32 = arith.constant 0 : i32
    %c0_i32_0 = arith.constant 0 : i32
    %c0_i32_1 = arith.constant 0 : i32
    return %c0_i32, %c0_i32_0 : i32, i32
  }
  func.func @transform_3(%arg0: i32) -> (i32, i32) {
    %c0_i32 = arith.constant 0 : i32
    %c0_i32_0 = arith.constant 0 : i32
    %c0_i32_1 = arith.constant 0 : i32
    return %c0_i32, %c0_i32_0 : i32, i32
  }
}

</mosaic_0001>

<llo_original>
// kernel: bifpn_add2.1
$region0: #{bifpn_add2.1}
  #allocation0 [shape = 'u32[]', space=smem, size = 0x4, offset = 0x4, fixed_abs, tag = 'smem constant byte address 0x4 - core index']
  #allocation1 [shape = 'u32[72,128]{1,0:T(1,128)}', space=vmem, size = 0x9000, scoped, tag = 'internal scratch']
  %s0 = inlined_call_operand.vmem [shape: f32[2], index: 0, kind: input, shape index: {}]
  %s1 = inlined_call_operand.vmem [shape: f32[2,1024], index: 1, kind: input, shape index: {}]
  %s2 = inlined_call_operand.vmem [shape: f32[2,1024], index: 2, kind: input, shape index: {}]
  %s3 = inlined_call_operand.vmem [shape: f32[4,1024], index: 3, kind: output, shape index: {}]
  %s4 = sld [smem:[#allocation0]]
  $region26: #{bifpn_add2.1} parent=0
    _
  %s6 = ssub.s32 1, %s4
  %s7 = scalar_select 0, %s6, %s4
  $region1: #{bifpn_add2.1} parent=0
    #allocation2 [shape = 'u8[512]{0}', space=smem, size = 0x200, scoped, tag = 'input window, operand 0, single buffered']
    #allocation3 [shape = 's32[1]{0}', space=sflag, size = 0x4, scoped, tag = 'scoped memory for bifpn_add2.1']
    %8 = vsyncpa [#allocation3], 0
    // Predicated region
    $region2: #{bifpn_add2.1} parent=1 // pred_check
      _
    $region3: #{bifpn_add2.1} parent=1 // pred_check_branch
      %10 = sbr.rel (0) target = $region5
    $region4: #{bifpn_add2.1} parent=1 // pred_region
      %12 = vsyncadd [#allocation3], 0
      %s14 = sshll.u32 %s0, 4
      %s15 = int_to_ptr.vmem [resolvable:$true] %s14
      %17 = dma.vmem_to_smem %s15, 16, [#allocation2], [#allocation3]
    $region5: #{bifpn_add2.1} parent=1 // pred_fallthru
      _
    // Predicated region
    $region6: #{bifpn_add2.1} parent=1 // pred_check
      _
    $region7: #{bifpn_add2.1} parent=1 // pred_check_branch
      %19 = sbr.rel (0) target = $region9
    $region8: #{bifpn_add2.1} parent=1 // pred_region
      _
    $region9: #{bifpn_add2.1} parent=1 // pred_fallthru
      _
    // Predicated region
    $region10: #{bifpn_add2.1} parent=1 // pred_check
      _
    $region11: #{bifpn_add2.1} parent=1 // pred_check_branch
      %21 = sbr.rel (0) target = $region13
    $region12: #{bifpn_add2.1} parent=1 // pred_region
      _
    $region13: #{bifpn_add2.1} parent=1 // pred_fallthru
      _
    // Predicated region
    $region14: #{bifpn_add2.1} parent=1 // pred_check
      _
    $region15: #{bifpn_add2.1} parent=1 // pred_check_branch
      %23 = sbr.rel (0) target = $region17
    $region16: #{bifpn_add2.1} parent=1 // pred_region
      %25 = dma.done [#allocation3], 16
    $region17: #{bifpn_add2.1} parent=1 // pred_fallthru
      _
    %26 = sfence
    %s27 = sld [smem:[#allocation2]]
    %s28 = sld [smem:[#allocation2 + $0x1]]
    %s29 = sadd.f32 %s27, %s28
    %s30 = sadd.f32 %s29, 0.0001
    %v31 = vstv %s30
    %v32 = vrcp.pop %v31
    %v33 = vmul.f32 %v31, %v32
    %v34 = vsub.f32 1.0, %v33
    %v35 = vmul.f32 %v32, %v34
    %v36 = vadd.f32 %v32, %v35
    %vm37 = vweird.f32 %v31
    %vm38 = vweird.f32 %v32
    %vm39 = vmor %vm37, %vm38
    %v40 = vsel %vm39, %v32, %v36
    %v41 = vand.u32 2147483647, %v31
    %vm42 = vcmp.eq.f32.partialorder %v41, 8.507059e+37
    %v43 = vand.u32 %v31, 2147483648
    %v44 = vor.u32 1.1754944e-38, %v43
    %v45 = vsel %vm42, %v44, %v40
    %s46 = vtos %v45
    %s47 = smul.f32 %s27, %s46
    %v48 = vstv %s30
    %v49 = vrcp.pop %v48
    %v50 = vmul.f32 %v48, %v49
    %v51 = vsub.f32 1.0, %v50
    %v52 = vmul.f32 %v49, %v51
    %v53 = vadd.f32 %v49, %v52
    %vm54 = vweird.f32 %v48
    %vm55 = vweird.f32 %v49
    %vm56 = vmor %vm54, %vm55
    %v57 = vsel %vm56, %v49, %v53
    %v58 = vand.u32 2147483647, %v48
    %vm59 = vcmp.eq.f32.partialorder %v58, 8.507059e+37
    %v60 = vand.u32 %v48, 2147483648
    %v61 = vor.u32 1.1754944e-38, %v60
    %v62 = vsel %vm59, %v61, %v57
    %s63 = vtos %v62
    %s64 = smul.f32 %s28, %s63
    %v65 = vld [vmem:[%s1] sm:$0xff]
    %v66 = vld [vmem:[%s1 + $0x8] sm:$0xff]
    %v67 = vstv %s47
    %v68 = vmul.f32 %v67, %v65
    %v69 = vmul.f32 %v67, %v66
    %72 = vst [vmem:[#allocation1] ss:$2 sm:$0xff] %v68
    %s73 = scalar_lea.vmem [#allocation1], 16
    %74 = vst [vmem:[%s73] ss:$2 sm:$0xff] %v69
    %v75 = vld.sshfl [vmem:[#allocation1] sm:$0xff pattern:$0x75643120]
    %v76 = vld.sshfl [vmem:[#allocation1 + $0x8] sm:$0xff pattern:$0x75643120]
    %v77 = vld.sshfl [vmem:[#allocation1 + $0x10] sm:$0xff pattern:$0x75643120]
    %v78 = vld.sshfl [vmem:[#allocation1 + $0x18] sm:$0xff pattern:$0x75643120]
    %83 = vst [vmem:[%s3] sm:$0x33] %v75
    %84 = vst [vmem:[%s3 + $0x8] sm:$0x33] %v76
    %85 = vst [vmem:[%s3 + $0x10] sm:$0x33] %v77
    %86 = vst [vmem:[%s3 + $0x18] sm:$0x33] %v78
    %v87 = vld [vmem:[%s2] sm:$0xff]
    %v88 = vld [vmem:[%s2 + $0x8] sm:$0xff]
    %v89 = vstv %s64
    %v90 = vmul.f32 %v89, %v87
    %v91 = vmul.f32 %v89, %v88
    %s94 = scalar_lea.vmem [#allocation1], 1
    %95 = vst [vmem:[%s94] ss:$2 sm:$0xff] %v90
    %s96 = scalar_lea.vmem [#allocation1], 17
    %97 = vst [vmem:[%s96] ss:$2 sm:$0xff] %v91
    %v98 = vld.sshfl [vmem:[#allocation1] sm:$0xff pattern:$0x75643120]
    %v99 = vld.sshfl [vmem:[#allocation1 + $0x8] sm:$0xff pattern:$0x75643120]
    %v100 = vld.sshfl [vmem:[#allocation1 + $0x10] sm:$0xff pattern:$0x75643120]
    %v101 = vld.sshfl [vmem:[#allocation1 + $0x18] sm:$0xff pattern:$0x75643120]
    %106 = vst [vmem:[%s3] sm:$0xcc] %v98
    %107 = vst [vmem:[%s3 + $0x8] sm:$0xcc] %v99
    %108 = vst [vmem:[%s3 + $0x10] sm:$0xcc] %v100
    %109 = vst [vmem:[%s3 + $0x18] sm:$0xcc] %v101
    // Predicated region
    $region18: #{bifpn_add2.1} parent=1 // pred_check
      _
    $region19: #{bifpn_add2.1} parent=1 // pred_check_branch
      %111 = sbr.rel (0) target = $region21
    $region20: #{bifpn_add2.1} parent=1 // pred_region
      _
    $region21: #{bifpn_add2.1} parent=1 // pred_fallthru
      _
    // Predicated region
    $region22: #{bifpn_add2.1} parent=1 // pred_check
      _
    $region23: #{bifpn_add2.1} parent=1 // pred_check_branch
      %113 = sbr.rel (0) target = $region25
    $region24: #{bifpn_add2.1} parent=1 // pred_region
      _
    $region25: #{bifpn_add2.1} parent=1 // pred_fallthru
      _
    %114 = vsyncpa [#allocation3], 1

</llo_original>
